<compile_context>
chip_gen: v7x
topology: tpu7x:2x2x1
jax: 0.10.0
libtpu: 0.0.40
codegen_flags: <defaults>
</compile_context>

<pallas_src>
import math

import numpy as np
import jax
import jax.numpy as jnp
from jax.experimental import pallas as pl
from jax.experimental.pallas import tpu as pltpu


# ----------------------------------------------------------------------------
# Static operator construction (runs once at setup time)
# ----------------------------------------------------------------------------
def _adaptive_pool_matrix(out_size: int, in_size: int) -> np.ndarray:
    """M[o, i] such that (M @ x) == AdaptiveAvgPool1d(out_size)(x)."""
    m = np.zeros((out_size, in_size), dtype=np.float32)
    for o in range(out_size):
        s = (o * in_size) // out_size
        e = -((-(o + 1) * in_size) // out_size)  # ceil((o+1)*in/out)
        m[o, s:e] = 1.0 / float(e - s)
    return m


def _upsample_matrix(out_size: int, in_size: int) -> np.ndarray:
    """U[o, i] for 1-D linear interpolation with align_corners=True."""
    u = np.zeros((out_size, in_size), dtype=np.float32)
    if in_size == 1:
        u[:, 0] = 1.0
        return u
    for o in range(out_size):
        src = 0.0 if out_size == 1 else o * (in_size - 1) / (out_size - 1)
        i0 = min(int(math.floor(src)), in_size - 2)
        frac = src - i0
        u[o, i0] += 1.0 - frac
        u[o, i0 + 1] += frac
    return u


def _pick_hw_tile(hw: int, max_tile: int = 1024) -> int:
    """Largest lane-aligned tile (multiple of 128) dividing hw, else full hw."""
    for cand in (max_tile, 1024, 512, 256, 128):
        if cand <= max_tile and hw % cand == 0:
            return cand
    return hw  # not 128-divisible: single full-extent block (still legal)


# ----------------------------------------------------------------------------
# Pallas kernels
# ----------------------------------------------------------------------------
def _pool_conv_kernel(x_ref, mpool_ref, w_ref, shift_ref, z_ref, acc_ref):
    """Pass 1 (P > 1): pooled accumulates x_tile @ m_pool^T over HW tiles;
    on the last tile: z = relu(w_scaled @ pooled + shift)."""
    t = pl.program_id(1)

    @pl.when(t == 0)
    def _():
        acc_ref[...] = jnp.zeros_like(acc_ref)

    acc_ref[...] += jnp.dot(x_ref[0], mpool_ref[...],
                            preferred_element_type=jnp.float32)

    @pl.when(t == pl.num_programs(1) - 1)
    def _():
        z = jnp.dot(w_ref[...], acc_ref[...],
                    preferred_element_type=jnp.float32)
        z_ref[0] = jnp.maximum(z + shift_ref[...], 0.0).astype(z_ref.dtype)


def _pool1_conv_kernel(x_ref, w_ref, shift_ref, z_ref, acc_ref):
    """Pass 1 (P == 1): global mean (1/HW folded into w) + 1x1 conv + ReLU.
    No degenerate K=1 / N=1 matmul for the pooling itself."""
    t = pl.program_id(1)

    @pl.when(t == 0)
    def _():
        acc_ref[...] = jnp.zeros_like(acc_ref)

    acc_ref[...] += jnp.sum(x_ref[0].astype(jnp.float32), axis=-1,
                            keepdims=True)

    @pl.when(t == pl.num_programs(1) - 1)
    def _():
        z = jnp.dot(w_ref[...], acc_ref[...],
                    preferred_element_type=jnp.float32)
        z_ref[0] = jnp.maximum(z + shift_ref[...], 0.0).astype(z_ref.dtype)


def _upsample_kernel(z_ref, mup_ref, o_ref):
    """Pass 2 (P > 1): out HW-tile = relu_z @ m_up^T (lane-dense store)."""
    o_ref[0] = jnp.dot(z_ref[0], mup_ref[...],
                       preferred_element_type=jnp.float32).astype(o_ref.dtype)


def _broadcast_kernel(z_ref, o_ref):
    """Pass 2 (P == 1): upsampling a 1x1 map is a pure broadcast (VPU)."""
    o_ref[0] = jnp.broadcast_to(z_ref[0], o_ref.shape[1:]).astype(o_ref.dtype)


# ----------------------------------------------------------------------------
# Per-stage wrapper (channels-first, no transposes)
# ----------------------------------------------------------------------------
def _pyramid_stage_cf(x_cf, conv_w, bn_scale, bn_shift, pool_size, H, W,
                      max_hw_tile=1024):
    """x_cf: (N, Cin, H*W) (bf16 recommended). Returns (N, Cout, H*W) f32."""
    N, Cin, HW = x_cf.shape
    Cout = conv_w.shape[0]
    P = pool_size
    P2 = P * P
    thw = _pick_hw_tile(HW, max_hw_tile)
    n_t = HW // thw

    # Fold BN scale into the 1x1-conv weight (exact refactor of the affine).
    w_scaled = (jnp.asarray(bn_scale, jnp.float32)[:, None]
                * jnp.asarray(conv_w, jnp.float32))          # (Cout, Cin)
    shift = jnp.asarray(bn_shift, jnp.float32).reshape(Cout, 1)

    if P == 1:
        # Fold the 1/HW of the global mean into the weight as well.
        w_eff = w_scaled / float(HW)
        z = pl.pallas_call(
            _pool1_conv_kernel,
            out_shape=jax.ShapeDtypeStruct((N, Cout, 1), jnp.float32),
            grid_spec=pltpu.PrefetchScalarGridSpec(
                num_scalar_prefetch=0,
                grid=(N, n_t),
                in_specs=[
                    pl.BlockSpec((1, Cin, thw), lambda n, t: (n, 0, t)),
                    pl.BlockSpec((Cout, Cin), lambda n, t: (0, 0)),
                    pl.BlockSpec((Cout, 1), lambda n, t: (0, 0)),
                ],
                out_specs=pl.BlockSpec((1, Cout, 1), lambda n, t: (n, 0, 0)),
                scratch_shapes=[pltpu.VMEM((Cin, 1), jnp.float32)],
            ),
            compiler_params=pltpu.CompilerParams(
                dimension_semantics=("parallel", "arbitrary")),
        )(x_cf, w_eff, shift)

        return pl.pallas_call(
            _broadcast_kernel,
            out_shape=jax.ShapeDtypeStruct((N, Cout, HW), jnp.float32),
            grid_spec=pltpu.PrefetchScalarGridSpec(
                num_scalar_prefetch=0,
                grid=(N, n_t),
                in_specs=[pl.BlockSpec((1, Cout, 1), lambda n, t: (n, 0, 0))],
                out_specs=pl.BlockSpec((1, Cout, thw),
                                       lambda n, t: (n, 0, t)),
            ),
            compiler_params=pltpu.CompilerParams(
                dimension_semantics=("parallel", "parallel")),
        )(z)

    # Static pool / upsample operators, oriented for channels-first matmuls.
    m_pool_t = np.kron(_adaptive_pool_matrix(P, H),
                       _adaptive_pool_matrix(P, W)).T        # (HW, P2)
    m_up_t = np.kron(_upsample_matrix(H, P),
                     _upsample_matrix(W, P)).T               # (P2, HW)
    m_pool_t = jnp.asarray(m_pool_t).astype(x_cf.dtype)      # bf16 w/ x
    m_up_t = jnp.asarray(m_up_t, dtype=jnp.float32)          # keep f32

    # Pass 1: pool (HW-reduction) + 1x1 conv + folded-BN shift + ReLU.
    z = pl.pallas_call(
        _pool_conv_kernel,
        out_shape=jax.ShapeDtypeStruct((N, Cout, P2), jnp.float32),
        grid_spec=pltpu.PrefetchScalarGridSpec(
            num_scalar_prefetch=0,
            grid=(N, n_t),
            in_specs=[
                pl.BlockSpec((1, Cin, thw), lambda n, t: (n, 0, t)),
                pl.BlockSpec((thw, P2), lambda n, t: (t, 0)),
                pl.BlockSpec((Cout, Cin), lambda n, t: (0, 0)),
                pl.BlockSpec((Cout, 1), lambda n, t: (0, 0)),
            ],
            out_specs=pl.BlockSpec((1, Cout, P2), lambda n, t: (n, 0, 0)),
            scratch_shapes=[pltpu.VMEM((Cin, P2), jnp.float32)],
        ),
        compiler_params=pltpu.CompilerParams(
            dimension_semantics=("parallel", "arbitrary")),
    )(x_cf, m_pool_t, w_scaled, shift)

    # Pass 2: bilinear upsample, fully parallel over HW output tiles.
    return pl.pallas_call(
        _upsample_kernel,
        out_shape=jax.ShapeDtypeStruct((N, Cout, HW), jnp.float32),
        grid_spec=pltpu.PrefetchScalarGridSpec(
            num_scalar_prefetch=0,
            grid=(N, n_t),
            in_specs=[
                pl.BlockSpec((1, Cout, P2), lambda n, t: (n, 0, 0)),
                pl.BlockSpec((P2, thw), lambda n, t: (0, t)),
            ],
            out_specs=pl.BlockSpec((1, Cout, thw), lambda n, t: (n, 0, t)),
        ),
        compiler_params=pltpu.CompilerParams(
            dimension_semantics=("parallel", "parallel")),
    )(z, m_up_t)


# ----------------------------------------------------------------------------
# Full PSPModule wrapper
# ----------------------------------------------------------------------------
def psp_module(x_nchw, stage_params, sizes=(1, 2, 3, 6),
               compute_dtype=jnp.bfloat16, max_hw_tile=1024):
    """x_nchw: (N, Cin, H, W). stage_params: [(conv_w, scale, shift)] per size.
    Returns (N, Cin + len(sizes)*Cout, H, W)."""
    N, C, H, W = x_nchw.shape
    HW = H * W
    # Channels-first flatten is a zero-cost reshape: no NCHW<->NHWC transposes.
    x_cf = x_nchw.reshape(N, C, HW)
    if compute_dtype is not None:
        x_cf = x_cf.astype(compute_dtype)   # cast once, read by all 4 stages

    outs = []
    for P, (w, sc, sh) in zip(sizes, stage_params):
        o = _pyramid_stage_cf(x_cf, w, sc, sh, P, H, W, max_hw_tile)
        outs.append(o.reshape(N, -1, H, W))   # free reshape
    outs.append(x_nchw.astype(jnp.float32))
    # TODO(synk): the channel concat could be avoided entirely by writing each
    # stage directly into a channel slice of one preallocated output
    # (input_output_aliases); kept as plain-JAX glue here.
    return jnp.concatenate(outs, axis=1)


# ----------------------------------------------------------------------------
# Pure-JAX reference (f32) for correctness check
# ----------------------------------------------------------------------------
def _reference_stage(x, conv_w, bn_scale, bn_shift, P):
    N, C, H, W = x.shape
    ph = jnp.asarray(_adaptive_pool_matrix(P, H))
    pw = jnp.asarray(_adaptive_pool_matrix(P, W))
    uy = jnp.asarray(_upsample_matrix(H, P))
    ux = jnp.asarray(_upsample_matrix(W, P))
    pooled = jnp.einsum('ph,nchw,qw->ncpq', ph, x, pw)
    z = jnp.einsum('oc,ncpq->nopq', conv_w, pooled)
    z = z * bn_scale[None, :, None, None] + bn_shift[None, :, None, None]
    z = jnp.maximum(z, 0.0)
    return jnp.einsum('hp,nopq,wq->nohw', uy, z, ux)


def _reference_psp(x, stage_params, sizes):
    outs = [_reference_stage(x, w, sc, sh, P)
            for P, (w, sc, sh) in zip(sizes, stage_params)]
    outs.append(x)
    return jnp.concatenate(outs, axis=1)


if __name__ == "__main__":
    # PSPModule(in_channels=8, sizes=(1, 2, 3, 6)): each stage outputs
    # 8 // 4 = 2 channels; final concat -> 8 + 4*2 = 16 channels.
    N, Cin, H, W = 2, 8, 16, 16
    sizes = (1, 2, 3, 6)
    Cout = Cin // len(sizes)

    key = jax.random.PRNGKey(0)
    kx, *ks = jax.random.split(key, 1 + 5 * len(sizes))
    x = jax.random.normal(kx, (N, Cin, H, W), dtype=jnp.float32)

    eps = 1e-5
    stage_params = []
    for i, P in enumerate(sizes):
        kw, kg, kb, km, kv = ks[5 * i:5 * i + 5]
        conv_w = jax.random.normal(kw, (Cout, Cin), dtype=jnp.float32) * 0.5
        if P == 1:
            # pool_size == 1 -> use_batchnorm=False -> Conv2d has a bias.
            bias = 0.1 * jax.random.normal(kb, (Cout,), dtype=jnp.float32)
            scale = jnp.ones((Cout,), jnp.float32)
            shift = bias
        else:
            gamma = 1.0 + 0.1 * jax.random.normal(kg, (Cout,), jnp.float32)
            beta = 0.1 * jax.random.normal(kb, (Cout,), jnp.float32)
            mean = 0.1 * jax.random.normal(km, (Cout,), jnp.float32)
            var = jnp.abs(jax.random.normal(kv, (Cout,), jnp.float32)) + 0.5
            scale = gamma / jnp.sqrt(var + eps)
            shift = beta - mean * scale
        stage_params.append((conv_w, scale, shift))

    # max_hw_tile=128 so the HW-reduction (pool accumulation) path is
    # exercised even at this toy spatial size (HW=256 -> 2 tiles).
    out = psp_module(x, stage_params, sizes, max_hw_tile=128)
    out = jax.block_until_ready(out)

    ref = _reference_psp(x, stage_params, sizes)
    assert out.shape == (N, Cin + len(sizes) * Cout, H, W)
    # Relaxed tolerance: x / pool matrix go through the MXU in bf16
    # (f32 accumulation); everything else is f32.
    np.testing.assert_allclose(np.asarray(out), np.asarray(ref),
                               rtol=2e-2, atol=2e-2)
    print("KERNEL_OK")
</pallas_src>

<mosaic_0001>
module attributes {stable_mosaic.version = 11 : i64} {
  func.func @_pool1_conv_kernel(%arg0: i32, %arg1: i32, %arg2: memref<1x8x128xbf16, #tpu.memory_space<vmem>>, %arg3: memref<2x8xf32, #tpu.memory_space<vmem>>, %arg4: memref<2x1xf32, #tpu.memory_space<vmem>>, %arg5: memref<1x2x1xf32, #tpu.memory_space<vmem>>, %arg6: memref<8x1xf32, #tpu.memory_space<vmem>>) attributes {dimension_semantics = [#tpu.dimension_semantics<parallel>, #tpu.dimension_semantics<arbitrary>], iteration_bounds = array<i64: 2, 2>, scalar_prefetch = 0 : i64, scratch_operands = 1 : i64, tpu.core_type = #tpu.core_type<tc>, window_params = [{transform_indices = @transform_0, window_bounds = array<i64: 1, 8, 128>}, {pipeline_mode = #tpu.pipeline_mode<synchronous>, transform_indices = @transform_1, window_bounds = array<i64: 2, 8>}, {pipeline_mode = #tpu.pipeline_mode<synchronous>, transform_indices = @transform_2, window_bounds = array<i64: 2, 1>}, {transform_indices = @transform_3, window_bounds = array<i64: 1, 2, 1>}]} {
    %c0_i32 = arith.constant 0 : i32
    %0 = arith.cmpi eq, %arg1, %c0_i32 : i32
    %1 = arith.extui %0 : i1 to i32
    %c0_i32_0 = arith.constant 0 : i32
    %2 = arith.cmpi ne, %1, %c0_i32_0 : i32
    scf.if %2 {
      %cst_8 = arith.constant 0.000000e+00 : f32
      %14 = vector.broadcast %cst_8 : f32 to vector<8x1xf32>
      %c0_9 = arith.constant 0 : index
      %c0_10 = arith.constant 0 : index
      %15 = vector.load %arg6[%c0_9, %c0_10] : memref<8x1xf32, #tpu.memory_space<vmem>>, vector<8x1xf32>
      tpu.vector_store %arg6[%c0_9, %c0_10], %14 {strides = array<i32>} : memref<8x1xf32, #tpu.memory_space<vmem>>, vector<8x1xf32>,
    } else {
    }
    %c0 = arith.constant 0 : index
    %c0_1 = arith.constant 0 : index
    %3 = vector.load %arg6[%c0, %c0_1] : memref<8x1xf32, #tpu.memory_space<vmem>>, vector<8x1xf32>
    %c0_2 = arith.constant 0 : index
    %c0_3 = arith.constant 0 : index
    %c0_4 = arith.constant 0 : index
    %4 = vector.load %arg2[%c0_2, %c0_3, %c0_4] : memref<1x8x128xbf16, #tpu.memory_space<vmem>>, vector<1x8x128xbf16>
    %5 = vector.shape_cast %4 : vector<1x8x128xbf16> to vector<8x128xbf16>
    %6 = arith.extf %5 : vector<8x128xbf16> to vector<8x128xf32>
    %cst = arith.constant dense<0.000000e+00> : vector<8xf32>
    %7 = vector.multi_reduction <add>, %6, %cst [1] : vector<8x128xf32> to vector<8xf32>
    %8 = vector.shape_cast %7 : vector<8xf32> to vector<8x1xf32>
    %9 = arith.addf %3, %8 : vector<8x1xf32>
    %c0_5 = arith.constant 0 : index
    %c0_6 = arith.constant 0 : index
    %10 = vector.load %arg6[%c0_5, %c0_6] : memref<8x1xf32, #tpu.memory_space<vmem>>, vector<8x1xf32>
    tpu.vector_store %arg6[%c0_5, %c0_6], %9 {strides = array<i32>} : memref<8x1xf32, #tpu.memory_space<vmem>>, vector<8x1xf32>,
    %c1_i32 = arith.constant 1 : i32
    %11 = arith.cmpi eq, %arg1, %c1_i32 : i32
    %12 = arith.extui %11 : i1 to i32
    %c0_i32_7 = arith.constant 0 : i32
    %13 = arith.cmpi ne, %12, %c0_i32_7 : i32
    scf.if %13 {
      %c0_8 = arith.constant 0 : index
      %c0_9 = arith.constant 0 : index
      %14 = vector.load %arg3[%c0_8, %c0_9] : memref<2x8xf32, #tpu.memory_space<vmem>>, vector<2x8xf32>
      %c0_10 = arith.constant 0 : index
      %c0_11 = arith.constant 0 : index
      %15 = vector.load %arg6[%c0_10, %c0_11] : memref<8x1xf32, #tpu.memory_space<vmem>>, vector<8x1xf32>
      %cst_12 = arith.constant dense<0.000000e+00> : vector<2x1xf32>
      %16 = tpu.matmul %14, %15, %cst_12 {dimension_numbers = #tpu.dot_dimension_numbers<[1], [0], [0], [1], [0, 0, 1, 1], [], []>} : vector<2x8xf32>, vector<8x1xf32>, vector<2x1xf32> -> vector<2x1xf32>
      %c0_13 = arith.constant 0 : index
      %c0_14 = arith.constant 0 : index
      %17 = vector.load %arg4[%c0_13, %c0_14] : memref<2x1xf32, #tpu.memory_space<vmem>>, vector<2x1xf32>
      %18 = arith.addf %16, %17 : vector<2x1xf32>
      %cst_15 = arith.constant 0.000000e+00 : f32
      %19 = vector.broadcast %cst_15 : f32 to vector<2x1xf32>
      %20 = arith.maximumf %18, %19 : vector<2x1xf32>
      %c0_16 = arith.constant 0 : index
      %c0_17 = arith.constant 0 : index
      %c0_18 = arith.constant 0 : index
      %21 = vector.load %arg5[%c0_16, %c0_17, %c0_18] : memref<1x2x1xf32, #tpu.memory_space<vmem>>, vector<1x2x1xf32>
      %22 = vector.shape_cast %21 : vector<1x2x1xf32> to vector<2x1xf32>
      %23 = vector.shape_cast %20 : vector<2x1xf32> to vector<1x2x1xf32>
      tpu.vector_store %arg5[%c0_16, %c0_17, %c0_18], %23 {strides = array<i32>} : memref<1x2x1xf32, #tpu.memory_space<vmem>>, vector<1x2x1xf32>,
    } else {
    }
    return
  }
  func.func @transform_0(%arg0: i32, %arg1: i32) -> (i32, i32, i32) {
    %c0_i32 = arith.constant 0 : i32
    %c0_i32_0 = arith.constant 0 : i32
    return %arg0, %c0_i32, %arg1 : i32, i32, i32
  }
  func.func @transform_1(%arg0: i32, %arg1: i32) -> (i32, i32) {
    %c0_i32 = arith.constant 0 : i32
    %c0_i32_0 = arith.constant 0 : i32
    %c0_i32_1 = arith.constant 0 : i32
    return %c0_i32, %c0_i32_0 : i32, i32
  }
  func.func @transform_2(%arg0: i32, %arg1: i32) -> (i32, i32) {
    %c0_i32 = arith.constant 0 : i32
    %c0_i32_0 = arith.constant 0 : i32
    %c0_i32_1 = arith.constant 0 : i32
    return %c0_i32, %c0_i32_0 : i32, i32
  }
  func.func @transform_3(%arg0: i32, %arg1: i32) -> (i32, i32, i32) {
    %c0_i32 = arith.constant 0 : i32
    %c0_i32_0 = arith.constant 0 : i32
    %c0_i32_1 = arith.constant 0 : i32
    return %arg0, %c0_i32, %c0_i32_0 : i32, i32, i32
  }
}

</mosaic_0001>

<llo_original>
// kernel: tpu_custom_call.1
$region0: #{tpu_custom_call.1}
  #allocation0 [shape = 'u32[]', space=smem, size = 0x4, offset = 0x4, fixed_abs, tag = 'smem constant byte address 0x4 - core index']
  #allocation1 [shape = 'u32[144,128]{1,0:T(1,128)}', space=vmem, size = 0x12000, scoped, tag = 'internal scratch']
  #allocation2 [shape = 'f32[8,1]{1,0:T(8,128)}', space=vmem, size = 0x1000, scoped, tag = 'scratch operand']
  %s0 = inlined_call_operand.hbm [shape: bf16[2,8,256], index: 0, kind: input, shape index: {}]
  %s1 = inlined_call_operand.vmem [shape: f32[2,8], index: 1, kind: input, shape index: {}]
  %s2 = inlined_call_operand.vmem [shape: f32[2,1], index: 2, kind: input, shape index: {}]
  %s3 = inlined_call_operand.vmem [shape: f32[2,2,1], index: 3, kind: output, shape index: {}]
  %s4 = sld [smem:[#allocation0]]
  $region57: #{tpu_custom_call.1} parent=0
    _
  %s6 = ssub.s32 1, %s4
  %s7 = scalar_select 0, %s6, %s4
  $region1: #{tpu_custom_call.1} parent=0
    #allocation3 [shape = 'u8[4096]{0}', space=vmem, size = 0x1000, scoped, tag = 'input window, operand 0']
    #allocation4 [shape = 's32[2]{0}', space=sflag, size = 0x8, scoped, tag = 'scoped memory for tpu_custom_call.1']
    %8 = vsyncpa [#allocation4], 0
    %s9 = scalar_lea.sflag [#allocation4], 1
    %10 = vsyncpa %s9, 0
    loop: start=0, step=1, limit=6
    $region2: #{tpu_custom_call.1} parent=1 // loop_pre_header
      _
    $region3: #{tpu_custom_call.1} parent=1 // loop_header
      %s12 = sphi 0, %s16
      %p13 = scmp.ge.s32.totalorder %s12, 6
      %s19 = sphi 0, %s31
      %s20 = sphi 0, %s27
      %s21 = sphi 0, %s19
      %s22 = sphi 0, %s20
      %s23 = sphi 0, %s21
      %s24 = sphi 0, %s22
      %s36 = sphi 0, %s38
      %s39 = sphi 0, %s36
      %s40 = sphi 0, %s39
      %s56 = sphi 0, %s40
      %s60 = sphi 0, %s60
      %s62 = sphi 0, %s60
      %s63 = sphi 0, %s62
      %s77 = sphi 0, %s63
      %s81 = sphi 0, %s81
      %s83 = sphi 0, %s81
      %s84 = sphi 0, %s83
      %s98 = sphi 0, %s84
      %s104 = sphi 0, %s106
      %s107 = sphi 0, %s104
      %s108 = sphi 0, %s107
      %s124 = sphi 0, %s108
    $region4: #{tpu_custom_call.1} parent=1 // loop_header_branch
      %15 = sbr.rel (%p13) target = $region8
    $region5: #{tpu_custom_call.1} parent=1 // loop_body
      %s17 = ssub.s32 %s12, 1
      %s18 = ssub.s32 %s12, 2
      %s25 = sadd.s32 1, %s20
      %p26 = scmp.ge.s32.totalorder %s25, 2
      %s27 = scalar_select %p26, 0, %s25
      %s28 = sadd.s32 1, %s19
      %s29 = scalar_select %p26, %s28, %s19
      %p30 = scmp.ge.s32.totalorder %s29, 2
      %s31 = scalar_select %p30, 0, %s29
      %s32 = ssub.s32 %s19, %s31
      %s33 = ssub.s32 %s20, %s27
      %s34 = sor.u32 %s32, %s33
      %p35 = scmp.eq.s32.totalorder %s34, 0
      %s37 = sadd.s32 %s36, 1
      %s38 = scalar_select %p35, %s36, %s37
      %p41 = pneg %p35
      %p42 = scmp.eq.s32.totalorder %s12, 3
      %p43 = por %p41, %p42
      %p44 = scmp.ne.s32.totalorder %s36, %s39
      %p45 = scmp.eq.s32.totalorder %s12, 0
      %p46 = por %p44, %p45
      %p47 = scmp.ne.s32.totalorder %s36, %s39
      %p48 = scmp.eq.s32.totalorder %s17, 3
      %p49 = por %p47, %p48
      %p50 = scmp.ne.s32.totalorder %s39, %s40
      %p51 = scmp.eq.s32.totalorder %s17, 0
      %p52 = por %p50, %p51
      %p53 = scmp.ne.s32.totalorder %s39, %s40
      %p54 = scmp.eq.s32.totalorder %s18, 3
      %p55 = por %p53, %p54
      %p57 = scmp.ne.s32.totalorder %s40, %s56
      %p58 = scmp.eq.s32.totalorder %s18, 0
      %p59 = por %p57, %p58
      %s61 = sadd.s32 %s60, 1
      %p64 = scmp.eq.s32.totalorder %s12, 3
      %p65 = scmp.ne.s32.totalorder %s60, %s62
      %p66 = scmp.eq.s32.totalorder %s12, 0
      %p67 = por %p65, %p66
      %p68 = scmp.ne.s32.totalorder %s60, %s62
      %p69 = scmp.eq.s32.totalorder %s17, 3
      %p70 = por %p68, %p69
      %p71 = scmp.ne.s32.totalorder %s62, %s63
      %p72 = scmp.eq.s32.totalorder %s17, 0
      %p73 = por %p71, %p72
      %p74 = scmp.ne.s32.totalorder %s62, %s63
      %p75 = scmp.eq.s32.totalorder %s18, 3
      %p76 = por %p74, %p75
      %p78 = scmp.ne.s32.totalorder %s63, %s77
      %p79 = scmp.eq.s32.totalorder %s18, 0
      %p80 = por %p78, %p79
      %s82 = sadd.s32 %s81, 1
      %p85 = scmp.eq.s32.totalorder %s12, 3
      %p86 = scmp.ne.s32.totalorder %s81, %s83
      %p87 = scmp.eq.s32.totalorder %s12, 0
      %p88 = por %p86, %p87
      %p89 = scmp.ne.s32.totalorder %s81, %s83
      %p90 = scmp.eq.s32.totalorder %s17, 3
      %p91 = por %p89, %p90
      %p92 = scmp.ne.s32.totalorder %s83, %s84
      %p93 = scmp.eq.s32.totalorder %s17, 0
      %p94 = por %p92, %p93
      %p95 = scmp.ne.s32.totalorder %s83, %s84
      %p96 = scmp.eq.s32.totalorder %s18, 3
      %p97 = por %p95, %p96
      %p99 = scmp.ne.s32.totalorder %s84, %s98
      %p100 = scmp.eq.s32.totalorder %s18, 0
      %p101 = por %p99, %p100
      %s102 = ssub.s32 %s19, %s31
      %p103 = scmp.eq.s32.totalorder %s102, 0
      %s105 = sadd.s32 %s104, 1
      %s106 = scalar_select %p103, %s104, %s105
      %p109 = pneg %p103
      %p110 = scmp.eq.s32.totalorder %s12, 3
      %p111 = por %p109, %p110
      %p112 = scmp.ne.s32.totalorder %s104, %s107
      %p113 = scmp.eq.s32.totalorder %s12, 0
      %p114 = por %p112, %p113
      %p115 = scmp.ne.s32.totalorder %s104, %s107
      %p116 = scmp.eq.s32.totalorder %s17, 3
      %p117 = por %p115, %p116
      %p118 = scmp.ne.s32.totalorder %s107, %s108
      %p119 = scmp.eq.s32.totalorder %s17, 0
      %p120 = por %p118, %p119
      %p121 = scmp.ne.s32.totalorder %s107, %s108
      %p122 = scmp.eq.s32.totalorder %s18, 3
      %p123 = por %p121, %p122
      %p125 = scmp.ne.s32.totalorder %s108, %s124
      %p126 = scmp.eq.s32.totalorder %s18, 0
      %p127 = por %p125, %p126
      %p128 = scmp.le.s32.totalorder 1, %s12
      %p129 = scmp.lt.s32.totalorder %s12, 5
      %p130 = pnand %p128, %p129
      %p131 = pneg %p130
      // Predicated region
      $region9: #{tpu_custom_call.1} parent=5 // pred_check
        _
      $region10: #{tpu_custom_call.1} parent=5 // pred_check_branch
        %133 = sbr.rel (%p130) target = $region12
      $region11: #{tpu_custom_call.1} parent=5 // pred_region
        %s134 = ssub.s32 %s12, 1
        // Predicated region
        $region13: #{tpu_custom_call.1} parent=11 // pred_check
          %p135 = pneg %p73
        $region14: #{tpu_custom_call.1} parent=11 // pred_check_branch
          %137 = sbr.rel (%p135) target = $region16
        $region15: #{tpu_custom_call.1} parent=11 // pred_region
          _
        $region16: #{tpu_custom_call.1} parent=11 // pred_fallthru
          _
        // Predicated region
        $region17: #{tpu_custom_call.1} parent=11 // pred_check
          %p138 = pneg %p94
        $region18: #{tpu_custom_call.1} parent=11 // pred_check_branch
          %140 = sbr.rel (%p138) target = $region20
        $region19: #{tpu_custom_call.1} parent=11 // pred_region
          _
        $region20: #{tpu_custom_call.1} parent=11 // pred_fallthru
          _
      $region12: #{tpu_custom_call.1} parent=5 // pred_fallthru
        _
      %p141 = scmp.lt.s32.totalorder %s12, 4
      // Predicated region
      $region21: #{tpu_custom_call.1} parent=5 // pred_check
        %p142 = pneg %p141
      $region22: #{tpu_custom_call.1} parent=5 // pred_check_branch
        %144 = sbr.rel (%p142) target = $region24
      $region23: #{tpu_custom_call.1} parent=5 // pred_region
        // Predicated region
        $region25: #{tpu_custom_call.1} parent=23 // pred_check
          %p145 = pneg %p46
        $region26: #{tpu_custom_call.1} parent=23 // pred_check_branch
          %147 = sbr.rel (%p145) target = $region28
        $region27: #{tpu_custom_call.1} parent=23 // pred_region
          %s148 = sand.u32 %s36, 1
          %s149 = scalar_lea.sflag [#allocation4], %s148
          %s150 = sand.u32 %s36, 1
          %s151 = smul.addr %s150, 4
          %s152 = scalar_lea.vmem [#allocation3], %s151
          %s154 = ssub.s32 64, 64
          %155 = vsyncadd %s149, %s154
          %s156 = smul.addr %s19, 2
          %s157 = sadd.s32 %s20, %s156
          %s158 = smul.addr %s157, 64
          %s159 = scalar_lea.hbm %s0, %s158
          %s161 = sshll.u32 %s152, 4
          %s162 = int_to_ptr.vmem [resolvable:$true] %s161
          %164 = dma.hbm_to_vmem [thread:$0]  %s159, 64, %s162, %s149
        $region28: #{tpu_custom_call.1} parent=23 // pred_fallthru
          _
      $region24: #{tpu_custom_call.1} parent=5 // pred_fallthru
        _
      %p165 = scmp.le.s32.totalorder 1, %s12
      %p166 = scmp.lt.s32.totalorder %s12, 5
      %p167 = pnand %p165, %p166
      %p168 = pneg %p167
      // Predicated region
      $region29: #{tpu_custom_call.1} parent=5 // pred_check
        _
      $region30: #{tpu_custom_call.1} parent=5 // pred_check_branch
        %170 = sbr.rel (%p167) target = $region32
      $region31: #{tpu_custom_call.1} parent=5 // pred_region
        %s171 = ssub.s32 %s12, 1
        %s172 = sand.u32 %s39, 1
        %s173 = scalar_lea.sflag [#allocation4], %s172
        %s174 = sand.u32 %s39, 1
        %s175 = smul.addr %s174, 4
        %s176 = scalar_lea.vmem [#allocation3], %s175
        // Predicated region
        $region33: #{tpu_custom_call.1} parent=31 // pred_check
          %p177 = pneg %p52
        $region34: #{tpu_custom_call.1} parent=31 // pred_check_branch
          %179 = sbr.rel (%p177) target = $region36
        $region35: #{tpu_custom_call.1} parent=31 // pred_region
          %180 = dma.done %s173, 64
        $region36: #{tpu_custom_call.1} parent=31 // pred_fallthru
          _
        %s181 = sand.u32 %s39, 1
        %s182 = scalar_lea.sflag [#allocation4], %s181
        %s183 = sand.u32 %s39, 1
        %s184 = smul.addr %s183, 4
        %s185 = scalar_lea.vmem [#allocation3], %s184
        %p186 = pneg %p52
        %p187 = pneg %p49
        %p188 = pneg %p73
        %p189 = pneg %p70
        %p190 = pneg %p94
        %p191 = pneg %p91
        %p192 = pneg %p120
        %p193 = pneg %p117
        %p194 = scmp.lt.s32.totalorder %s21, 1
        %s195 = scalar_select %p194, %s21, 1
        %s196 = smul.addr %s195, 2
        %s197 = scalar_lea.vmem %s3, %s196
        %p198 = scmp.lt.s32.totalorder %s21, 1
        %s199 = scalar_select %p198, %s21, 1
        %s200 = smul.addr %s199, 2
        %s201 = scalar_lea.vmem %s3, %s200
        %p202 = scmp.eq.s32.totalorder %s22, 0
        // Predicated region
        $region37: #{tpu_custom_call.1} parent=31 // pred_check
          %p203 = pneg %p202
        $region38: #{tpu_custom_call.1} parent=31 // pred_check_branch
          %205 = sbr.rel (%p203) target = $region40
        $region39: #{tpu_custom_call.1} parent=31 // pred_region
          %vm206 = vcmask 7168
          %207 = vst.msk [vmem:[#allocation2] sm:$0xff] %vm206, 0.0
        $region40: #{tpu_custom_call.1} parent=31 // pred_fallthru
          _
        %v208 = vld [vmem:[#allocation2] sm:$0xff]
        %v209 = vld [vmem:[%s176] sm:$0xf]
        %v210 = vunpack.c.l.bf16 %v209
        %211 = vadd.xlane.f32.xlu0 %v210
        %v212 = vpop.xlane.xlu0 %211
        %v213 = vadd.f32 %v208, %v212
        %vm214 = vcmask 7168
        %215 = vst.msk [vmem:[#allocation2] sm:$0xff] %vm214, %v213
        %p216 = scmp.eq.s32.totalorder %s22, 1
        // Predicated region
        $region41: #{tpu_custom_call.1} parent=31 // pred_check
          %p217 = pneg %p216
        $region42: #{tpu_custom_call.1} parent=31 // pred_check_branch
          %219 = sbr.rel (%p217) target = $region44
        $region43: #{tpu_custom_call.1} parent=31 // pred_region
          %v220 = vld [vmem:[%s1] sm:$0x3]
          %v221 = vld [vmem:[#allocation2] sm:$0xff]
          %v222 = vld [vmem:[%s2] sm:$0x3]
          %vm223 = vcmask 64512
          %v225 = vsel %vm223, %v220, 0
          %227 = vmatprep.subr.mxu0 0.0
          %228 = vmatpush1.msra.mxu0 %v221
          %229 = vmatprep.subr.mxu0 0.0
          %230 = vmatpush1.msra.mxu0 0.0
          %231 = vmatprep.subr.mxu0 0.0
          %232 = vmatpush1.msra.mxu0 0.0
          %233 = vmatprep.subr.mxu0 0.0
          %234 = vmatpush1.msra.mxu0 0.0
          %235 = vmatprep.subr.mxu0 0.0
          %236 = vmatpush1.msra.mxu0 0.0
          %237 = vmatprep.subr.mxu0 0.0
          %238 = vmatpush1.msra.mxu0 0.0
          %239 = vmatprep.subr.mxu0 0.0
          %240 = vmatpush1.msra.mxu0 0.0
          %241 = vmatprep.subr.mxu0 0.0
          %242 = vmatpush1.msra.mxu0 0.0
          %243 = vmatprep.subr.mxu0 0.0
          %244 = vmatpush1.msra.mxu0 0.0
          %245 = vmatprep.subr.mxu0 0.0
          %246 = vmatpush1.msra.mxu0 0.0
          %247 = vmatprep.subr.mxu0 0.0
          %248 = vmatpush1.msra.mxu0 0.0
          %249 = vmatprep.subr.mxu0 0.0
          %250 = vmatpush1.msra.mxu0 0.0
          %251 = vmatprep.subr.mxu0 0.0
          %252 = vmatpush1.msra.mxu0 0.0
          %253 = vmatprep.subr.mxu0 0.0
          %254 = vmatpush1.msra.mxu0 0.0
          %255 = vmatprep.subr.mxu0 0.0
          %256 = vmatpush1.msra.mxu0 0.0
          %257 = vmatprep.subr.mxu0 0.0
          %258 = vmatpush1.msra.mxu0 0.0
          %259 = vmatprep.subr.mxu0 0.0
          %260 = vmatpush1.msra.mxu0 0.0
          %261 = vmatprep.subr.mxu0 0.0
          %262 = vmatpush1.msra.mxu0 0.0
          %263 = vmatprep.subr.mxu0 0.0
          %264 = vmatpush1.msra.mxu0 0.0
          %265 = vmatprep.subr.mxu0 0.0
          %266 = vmatpush1.msra.mxu0 0.0
          %267 = vmatprep.subr.mxu0 0.0
          %268 = vmatpush1.msra.mxu0 0.0
          %269 = vmatprep.subr.mxu0 0.0
          %270 = vmatpush1.msra.mxu0 0.0
          %271 = vmatprep.subr.mxu0 0.0
          %272 = vmatpush1.msra.mxu0 0.0
          %273 = vmatprep.subr.mxu0 0.0
          %274 = vmatpush1.msra.mxu0 0.0
          %275 = vmatprep.subr.mxu0 0.0
          %276 = vmatpush1.msra.mxu0 0.0
          %277 = vmatprep.subr.mxu0 0.0
          %278 = vmatpush1.msra.mxu0 0.0
          %279 = vmatprep.subr.mxu0 0.0
          %280 = vmatpush1.msra.mxu0 0.0
          %281 = vmatprep.subr.mxu0 0.0
          %282 = vmatpush1.msra.mxu0 0.0
          %283 = vmatprep.subr.mxu0 0.0
          %284 = vmatpush1.msra.mxu0 0.0
          %285 = vmatprep.subr.mxu0 0.0
          %286 = vmatpush1.msra.mxu0 0.0
          %287 = vmatprep.subr.mxu0 0.0
          %288 = vmatpush1.msra.mxu0 0.0
          %289 = vmatprep.subr.mxu0 0.0
          %290 = vmatpush1.msra.mxu0 0.0
          %291 = vmatprep.mubr.f32.mxu0 0.0
          %292 = vmatmul.mubr.f32.gmra.mrb[0].mxu0 %v225
          %v293 = vpop.f32.mrb[0].mxu0
          %v294 = vadd.f32 %v222, %v293
          %v295 = vpop.f32.mrb[0].mxu0
          %296 = vdwg.mxu0
          %v297 = vmax.f32 %v294, 0.0
          %vm298 = vcmask 1024
          %299 = vst.msk [vmem:[%s201] sm:$0x3] %vm298, %v297
        $region44: #{tpu_custom_call.1} parent=31 // pred_fallthru
          _
        %p300 = scmp.lt.s32.totalorder %s21, 1
        %s301 = scalar_select %p300, %s21, 1
        %s302 = smul.addr %s301, 2
        %s303 = scalar_lea.vmem %s3, %s302
        // Predicated region
        $region45: #{tpu_custom_call.1} parent=31 // pred_check
          %p304 = pneg %p117
        $region46: #{tpu_custom_call.1} parent=31 // pred_check_branch
          %306 = sbr.rel (%p304) target = $region48
        $region47: #{tpu_custom_call.1} parent=31 // pred_region
          _
        $region48: #{tpu_custom_call.1} parent=31 // pred_fallthru
          _
      $region32: #{tpu_custom_call.1} parent=5 // pred_fallthru
        _
      %p307 = scmp.le.s32.totalorder 2, %s12
      // Predicated region
      $region49: #{tpu_custom_call.1} parent=5 // pred_check
        %p308 = pneg %p307
      $region50: #{tpu_custom_call.1} parent=5 // pred_check_branch
        %310 = sbr.rel (%p308) target = $region52
      $region51: #{tpu_custom_call.1} parent=5 // pred_region
        %s311 = ssub.s32 %s12, 2
        // Predicated region
        $region53: #{tpu_custom_call.1} parent=51 // pred_check
          %p312 = pneg %p123
        $region54: #{tpu_custom_call.1} parent=51 // pred_check_branch
          %314 = sbr.rel (%p312) target = $region56
        $region55: #{tpu_custom_call.1} parent=51 // pred_region
          %p315 = scmp.lt.s32.totalorder %s23, 1
          %s316 = scalar_select %p315, %s23, 1
          %s317 = smul.addr %s316, 2
          %s318 = scalar_lea.vmem %s3, %s317
        $region56: #{tpu_custom_call.1} parent=51 // pred_fallthru
          _
      $region52: #{tpu_custom_call.1} parent=5 // pred_fallthru
        _
    $region6: #{tpu_custom_call.1} parent=1 // loop_footer
      %s16 = sadd.s32 1, %s12
    $region7: #{tpu_custom_call.1} parent=1 // loop_footer_branch
      %11 = sbr.rel target = $region3
    $region8: #{tpu_custom_call.1} parent=1 // loop_exit
      _
    %319 = vsyncpa [#allocation4], 1
    %s320 = scalar_lea.sflag [#allocation4], 1
    %321 = vsyncpa %s320, 1

</llo_original>
